<compile_context>
chip_gen: v7x
topology: tpu7x:2x2x1
jax: 0.10.0
libtpu: 0.0.40
codegen_flags: <defaults>
</compile_context>

<pallas_src>
import math

import jax
import jax.numpy as jnp
from jax.experimental import pallas as pl
from jax.experimental.pallas import tpu as pltpu

B = 2                       # batch
CIN = 4                     # in_channels of x
S = 16                      # resolution (img_size)
HW = S * S
W_DIM = 32                  # w_dim
DIM = 4                     # cfg.channels_dict[str(S)].dim
TWO_D = 2 * DIM             # sin + cos rows
COORD_DIM = 2               # cfg.coord_dim
FOURIER_SCALE = 10.0        # cfg.fourier_scale
COUT = CIN + 2 * DIM        # use_cosine=True -> sin + cos
WEIGHT_GAIN = 1.0 / math.sqrt(W_DIM)   # FullyConnectedLayer.weight_gain (lr_multiplier=1)
HALF_PI = math.pi / 2.0
LOG2_S = S.bit_length() - 1
assert (1 << LOG2_S) == S, "in-kernel coord generation assumes power-of-two resolution"


def coord_fuser_kernel(x_ref, p_ref, out_ref):
    # x_ref:   [B, CIN, HW]        spatial on lanes -> full-width unmasked stores
    # p_ref:   [B, 3*TWO_D, 1]     sublane-stacked [wx|wx | wy|wy | bias|bias+pi/2]
    #                              (wx/wy pre-scaled by FOURIER_SCALE in the wrapper)
    # out_ref: [B, COUT, HW]
    wx = p_ref[:, 0:TWO_D, :]                     # [B, 2*DIM, 1]
    wy = p_ref[:, TWO_D:2 * TWO_D, :]             # [B, 2*DIM, 1]
    ph = p_ref[:, 2 * TWO_D:3 * TWO_D, :]         # [B, 2*DIM, 1]

    # generate_coords(), computed in-kernel from an iota (no coords input DMA):
    #   p = i*S + j ; x = j/S*2-1 ; y = (S-1-i)/S*2-1  (exact integer row/col split)
    pidx = jax.lax.broadcasted_iota(jnp.int32, (1, 1, HW), 2)
    i = pidx >> LOG2_S                            # row index
    j = pidx & (S - 1)                            # col index
    cx = j.astype(jnp.float32) * (2.0 / S) - 1.0                  # [1, 1, HW]
    cy = (S - 1 - i).astype(jnp.float32) * (2.0 / S) - 1.0        # [1, 1, HW]

    # einsum('bdc,bcxy->bdxy', W, coords) + bias, with the sin/cos pair folded
    # into one EUP call: rows 0:DIM -> sin, rows DIM:2*DIM -> cos = sin(x+pi/2).
    embs = jnp.sin(wx * cx + wy * cy + ph)        # [B, 2*DIM, HW]

    # out = cat([x, sin(raw), cos(raw)], dim=channel)  -- two stores total.
    out_ref[:, 0:CIN, :] = x_ref[...]
    out_ref[:, CIN:COUT, :] = embs


def modulated_coord_fuser(x_nchw, w, fc_weight, fc_bias):
    """x_nchw: [B, CIN, S, S], w: [B, W_DIM] -> out: [B, CIN + 2*DIM, S, S]"""
    # Pure reshapes only (no transposes): NCHW row-major flattens to [B, C, HW].
    x_flat = x_nchw.reshape(B, CIN, HW)

    # FullyConnectedLayer hoisted into the wrapper:
    #   mod = w @ (weight * weight_gain).T + bias
    # affine output layout: entry 2*d + c (c in {x, y}) for the first 2*DIM
    # entries, then DIM bias entries. Pre-scale W by FOURIER_SCALE and stack the
    # sin/cos argument coefficients so the kernel does a single fused sin().
    mod = w @ (fc_weight * WEIGHT_GAIN).T + fc_bias[None, :]          # [B, 3*DIM]
    wx = FOURIER_SCALE * mod[:, 0:2 * DIM:2]                          # [B, DIM]  (c = 0, x)
    wy = FOURIER_SCALE * mod[:, 1:2 * DIM:2]                          # [B, DIM]  (c = 1, y)
    bb = mod[:, 2 * DIM:]                                             # [B, DIM]  bias
    params = jnp.concatenate(
        [wx, wx, wy, wy, bb, bb + HALF_PI], axis=1)[..., None]        # [B, 3*2*DIM, 1]

    out_flat = pl.pallas_call(
        coord_fuser_kernel,
        out_shape=jax.ShapeDtypeStruct((B, COUT, HW), jnp.float32),
        grid_spec=pltpu.PrefetchScalarGridSpec(
            num_scalar_prefetch=0,
            grid=(1,),                                   # single step: whole op is tiny
            in_specs=[
                pl.BlockSpec((B, CIN, HW), lambda g: (0, 0, 0)),
                pl.BlockSpec((B, 3 * TWO_D, 1), lambda g: (0, 0, 0)),
            ],
            out_specs=pl.BlockSpec((B, COUT, HW), lambda g: (0, 0, 0)),
        ),
        compiler_params=pltpu.CompilerParams(dimension_semantics=("arbitrary",)),
    )(x_flat, params)

    # Pure reshape back to NCHW to match the PyTorch module output.
    return out_flat.reshape(B, COUT, S, S)


def reference(x_nchw, w, fc_weight, fc_bias):
    """Pure-JAX transcription of the PyTorch forward (modulated Fourier branch)."""
    row = jnp.arange(S, dtype=jnp.float32) / S * 2.0 - 1.0
    cx = jnp.broadcast_to(row[None, :], (S, S))
    cy = jnp.broadcast_to(row[::-1][:, None], (S, S))
    coords = jnp.broadcast_to(jnp.stack([cx, cy], axis=0)[None], (B, 2, S, S))
    mod = w @ (fc_weight * WEIGHT_GAIN).T + fc_bias[None, :]
    Wm = FOURIER_SCALE * mod[:, :2 * DIM].reshape(B, DIM, 2)
    bm = mod[:, 2 * DIM:].reshape(B, DIM, 1, 1)
    raw = jnp.einsum('bdc,bcxy->bdxy', Wm, coords) + bm
    embs = jnp.concatenate([jnp.sin(raw), jnp.cos(raw)], axis=1)
    return jnp.concatenate([x_nchw, embs], axis=1)


if __name__ == "__main__":
    key = jax.random.PRNGKey(0)
    kx, kw, kp, kb = jax.random.split(key, 4)
    x = jax.random.normal(kx, (B, CIN, S, S), dtype=jnp.float32)
    w = jax.random.normal(kw, (B, W_DIM), dtype=jnp.float32)
    # FullyConnectedLayer(w_dim, W_size + b_size): weight ~ randn([out, in]);
    # module inits bias to 0 but it is a learnable param, so test nonzero values.
    fc_weight = jax.random.normal(kp, (DIM * COORD_DIM + DIM, W_DIM), dtype=jnp.float32)
    fc_bias = jax.random.normal(kb, (DIM * COORD_DIM + DIM,), dtype=jnp.float32)

    out = modulated_coord_fuser(x, w, fc_weight, fc_bias)
    out = jax.block_until_ready(out)

    ref = reference(x, w, fc_weight, fc_bias)
    assert out.shape == (B, CIN + 2 * DIM, S, S), out.shape
    # NOTE: cos computed as sin(x + pi/2) -> not bit-identical to jnp.cos, but
    # well within this tolerance.
    assert jnp.allclose(out, ref, atol=1e-4, rtol=1e-4), float(jnp.max(jnp.abs(out - ref)))
    print("KERNEL_OK")
</pallas_src>

<mosaic_0001>
module attributes {stable_mosaic.version = 11 : i64} {
  func.func @coord_fuser_kernel(%arg0: i32, %arg1: memref<2x4x256xf32, #tpu.memory_space<vmem>>, %arg2: memref<2x24x1xf32, #tpu.memory_space<vmem>>, %arg3: memref<2x12x256xf32, #tpu.memory_space<vmem>>) attributes {dimension_semantics = [#tpu.dimension_semantics<arbitrary>], iteration_bounds = array<i64: 1>, scalar_prefetch = 0 : i64, scratch_operands = 0 : i64, tpu.core_type = #tpu.core_type<tc>, window_params = [{pipeline_mode = #tpu.pipeline_mode<synchronous>, transform_indices = @transform_0, window_bounds = array<i64: 2, 4, 256>}, {pipeline_mode = #tpu.pipeline_mode<synchronous>, transform_indices = @transform_1, window_bounds = array<i64: 2, 24, 1>}, {pipeline_mode = #tpu.pipeline_mode<synchronous>, transform_indices = @transform_2, window_bounds = array<i64: 2, 12, 256>}]} {
    %c0 = arith.constant 0 : index
    %c0_0 = arith.constant 0 : index
    %c0_1 = arith.constant 0 : index
    %0 = vector.load %arg2[%c0, %c0_0, %c0_1] : memref<2x24x1xf32, #tpu.memory_space<vmem>>, vector<2x8x1xf32>
    %c0_2 = arith.constant 0 : index
    %c8 = arith.constant 8 : index
    %c0_3 = arith.constant 0 : index
    %1 = vector.load %arg2[%c0_2, %c8, %c0_3] : memref<2x24x1xf32, #tpu.memory_space<vmem>>, vector<2x8x1xf32>
    %c0_4 = arith.constant 0 : index
    %c16 = arith.constant 16 : index
    %c0_5 = arith.constant 0 : index
    %2 = vector.load %arg2[%c0_4, %c16, %c0_5] : memref<2x24x1xf32, #tpu.memory_space<vmem>>, vector<2x8x1xf32>
    %3 = tpu.iota {dimensions = array<i32: 2>} : vector<1x1x256xi32>
    %c4_i32 = arith.constant 4 : i32
    %4 = vector.broadcast %c4_i32 : i32 to vector<1x1x256xi32>
    %5 = arith.shrsi %3, %4 : vector<1x1x256xi32>
    %c15_i32 = arith.constant 15 : i32
    %6 = vector.broadcast %c15_i32 : i32 to vector<1x1x256xi32>
    %7 = arith.andi %3, %6 : vector<1x1x256xi32>
    %8 = arith.sitofp %7 : vector<1x1x256xi32> to vector<1x1x256xf32>
    %cst = arith.constant 1.250000e-01 : f32
    %9 = vector.broadcast %cst : f32 to vector<1x1x256xf32>
    %10 = arith.mulf %8, %9 : vector<1x1x256xf32>
    %cst_6 = arith.constant 1.000000e+00 : f32
    %11 = vector.broadcast %cst_6 : f32 to vector<1x1x256xf32>
    %12 = arith.subf %10, %11 : vector<1x1x256xf32>
    %c15_i32_7 = arith.constant 15 : i32
    %13 = vector.broadcast %c15_i32_7 : i32 to vector<1x1x256xi32>
    %14 = arith.subi %13, %5 : vector<1x1x256xi32>
    %15 = arith.sitofp %14 : vector<1x1x256xi32> to vector<1x1x256xf32>
    %cst_8 = arith.constant 1.250000e-01 : f32
    %16 = vector.broadcast %cst_8 : f32 to vector<1x1x256xf32>
    %17 = arith.mulf %15, %16 : vector<1x1x256xf32>
    %cst_9 = arith.constant 1.000000e+00 : f32
    %18 = vector.broadcast %cst_9 : f32 to vector<1x1x256xf32>
    %19 = arith.subf %17, %18 : vector<1x1x256xf32>
    %20 = vector.broadcast %0 : vector<2x8x1xf32> to vector<2x8x256xf32>
    %21 = vector.broadcast %12 : vector<1x1x256xf32> to vector<2x8x256xf32>
    %22 = arith.mulf %20, %21 : vector<2x8x256xf32>
    %23 = vector.broadcast %1 : vector<2x8x1xf32> to vector<2x8x256xf32>
    %24 = vector.broadcast %19 : vector<1x1x256xf32> to vector<2x8x256xf32>
    %25 = arith.mulf %23, %24 : vector<2x8x256xf32>
    %26 = arith.addf %22, %25 : vector<2x8x256xf32>
    %27 = vector.broadcast %2 : vector<2x8x1xf32> to vector<2x8x256xf32>
    %28 = arith.addf %26, %27 : vector<2x8x256xf32>
    %29 = math.sin %28 : vector<2x8x256xf32>
    %c0_10 = arith.constant 0 : index
    %c0_11 = arith.constant 0 : index
    %c0_12 = arith.constant 0 : index
    %30 = vector.load %arg1[%c0_10, %c0_11, %c0_12] : memref<2x4x256xf32, #tpu.memory_space<vmem>>, vector<2x4x256xf32>
    %c0_13 = arith.constant 0 : index
    %c0_14 = arith.constant 0 : index
    %c0_15 = arith.constant 0 : index
    %31 = vector.load %arg3[%c0_13, %c0_14, %c0_15] : memref<2x12x256xf32, #tpu.memory_space<vmem>>, vector<2x4x256xf32>
    tpu.vector_store %arg3[%c0_13, %c0_14, %c0_15], %30 {strides = array<i32>} : memref<2x12x256xf32, #tpu.memory_space<vmem>>, vector<2x4x256xf32>,
    %c0_16 = arith.constant 0 : index
    %c4 = arith.constant 4 : index
    %c0_17 = arith.constant 0 : index
    %32 = vector.load %arg3[%c0_16, %c4, %c0_17] : memref<2x12x256xf32, #tpu.memory_space<vmem>>, vector<2x8x256xf32>
    tpu.vector_store %arg3[%c0_16, %c4, %c0_17], %29 {strides = array<i32>} : memref<2x12x256xf32, #tpu.memory_space<vmem>>, vector<2x8x256xf32>,
    return
  }
  func.func @transform_0(%arg0: i32) -> (i32, i32, i32) {
    %c0_i32 = arith.constant 0 : i32
    %c0_i32_0 = arith.constant 0 : i32
    %c0_i32_1 = arith.constant 0 : i32
    %c0_i32_2 = arith.constant 0 : i32
    return %c0_i32, %c0_i32_0, %c0_i32_1 : i32, i32, i32
  }
  func.func @transform_1(%arg0: i32) -> (i32, i32, i32) {
    %c0_i32 = arith.constant 0 : i32
    %c0_i32_0 = arith.constant 0 : i32
    %c0_i32_1 = arith.constant 0 : i32
    %c0_i32_2 = arith.constant 0 : i32
    return %c0_i32, %c0_i32_0, %c0_i32_1 : i32, i32, i32
  }
  func.func @transform_2(%arg0: i32) -> (i32, i32, i32) {
    %c0_i32 = arith.constant 0 : i32
    %c0_i32_0 = arith.constant 0 : i32
    %c0_i32_1 = arith.constant 0 : i32
    %c0_i32_2 = arith.constant 0 : i32
    return %c0_i32, %c0_i32_0, %c0_i32_1 : i32, i32, i32
  }
}

</mosaic_0001>

<llo_original>
// kernel: tpu_custom_call.1
$region0: #{tpu_custom_call.1}
  #allocation0 [shape = 'u32[]', space=smem, size = 0x4, offset = 0x4, fixed_abs, tag = 'smem constant byte address 0x4 - core index']
  #allocation1 [shape = 'u32[144,128]{1,0:T(1,128)}', space=vmem, size = 0x12000, scoped, tag = 'internal scratch']
  %s0 = inlined_call_operand.vmem [shape: f32[2,4,256], index: 0, kind: input, shape index: {}]
  %s1 = inlined_call_operand.vmem [shape: f32[2,24,1], index: 1, kind: input, shape index: {}]
  %s2 = inlined_call_operand.vmem [shape: f32[2,12,256], index: 2, kind: output, shape index: {}]
  %s3 = sld [smem:[#allocation0]]
  $region18: #{tpu_custom_call.1} parent=0
    _
  %s5 = ssub.s32 1, %s3
  %s6 = scalar_select 0, %s5, %s3
  // Predicated region
  $region2: #{tpu_custom_call.1} parent=0 // pred_check
    _
  $region3: #{tpu_custom_call.1} parent=0 // pred_check_branch
    %8 = sbr.rel (0) target = $region5
  $region4: #{tpu_custom_call.1} parent=0 // pred_region
    _
  $region5: #{tpu_custom_call.1} parent=0 // pred_fallthru
    _
  // Predicated region
  $region6: #{tpu_custom_call.1} parent=0 // pred_check
    _
  $region7: #{tpu_custom_call.1} parent=0 // pred_check_branch
    %10 = sbr.rel (0) target = $region9
  $region8: #{tpu_custom_call.1} parent=0 // pred_region
    _
  $region9: #{tpu_custom_call.1} parent=0 // pred_fallthru
    _
  %v11 = vld [vmem:[%s1] sm:$0xff]
  %v12 = vld [vmem:[%s1 + $0x18] sm:$0xff]
  %v13 = vld [vmem:[%s1 + $0x8] sm:$0xff]
  %v14 = vld [vmem:[%s1 + $0x20] sm:$0xff]
  %v15 = vld [vmem:[%s1 + $0x10] sm:$0xff]
  %v16 = vld [vmem:[%s1 + $0x28] sm:$0xff]
  %v17 = vlaneseq
  %v18 = vand.u32 %v17, 127
  %v19 = vadd.s32 %v18, 128
  %v20 = vshra.s32 %v18, 4
  %v21 = vshra.s32 %v19, 4
  %v22 = vand.u32 %v18, 15
  %v23 = vand.u32 %v19, 15
  %v24 = vcvt.s32.f32 %v22
  %v25 = vcvt.s32.f32 %v23
  %v26 = vmul.f32 %v24, 0.125
  %v27 = vmul.f32 %v25, 0.125
  %v28 = vsub.f32 %v26, 1.0
  %v29 = vsub.f32 %v27, 1.0
  %v30 = vsub.s32 15, %v20
  %v31 = vsub.s32 15, %v21
  %v32 = vcvt.s32.f32 %v30
  %v33 = vcvt.s32.f32 %v31
  %v34 = vmul.f32 %v32, 0.125
  %v35 = vmul.f32 %v33, 0.125
  %v36 = vsub.f32 %v34, 1.0
  %v37 = vsub.f32 %v35, 1.0
  %39 = vset.pattern.permute.xlu0 0
  %40 = vperm.xlu0 %39, %v11
  %v41 = vpop.permute.xlu0 %40
  %44 = vset.pattern.permute.xlu0 0
  %45 = vperm.xlu0 %44, %v12
  %v46 = vpop.permute.xlu0 %45
  %v48 = vmul.f32 %v41, %v28
  %v49 = vmul.f32 %v41, %v29
  %v50 = vmul.f32 %v46, %v28
  %v51 = vmul.f32 %v46, %v29
  %53 = vset.pattern.permute.xlu0 0
  %54 = vperm.xlu0 %53, %v13
  %v55 = vpop.permute.xlu0 %54
  %58 = vset.pattern.permute.xlu0 0
  %59 = vperm.xlu0 %58, %v14
  %v60 = vpop.permute.xlu0 %59
  %v62 = vmul.f32 %v55, %v36
  %v63 = vmul.f32 %v55, %v37
  %v64 = vmul.f32 %v60, %v36
  %v65 = vmul.f32 %v60, %v37
  %v66 = vadd.f32 %v48, %v62
  %v67 = vadd.f32 %v49, %v63
  %v68 = vadd.f32 %v50, %v64
  %v69 = vadd.f32 %v51, %v65
  %71 = vset.pattern.permute.xlu0 0
  %72 = vperm.xlu0 %71, %v15
  %v73 = vpop.permute.xlu0 %72
  %76 = vset.pattern.permute.xlu0 0
  %77 = vperm.xlu0 %76, %v16
  %v78 = vpop.permute.xlu0 %77
  %v80 = vadd.f32 %v66, %v73
  %v81 = vadd.f32 %v67, %v73
  %v82 = vadd.f32 %v68, %v78
  %v83 = vadd.f32 %v69, %v78
  %v84 = vand.u32 2147483647, %v80
  %vm85 = vcmp.le.f32.partialorder %v84, 0.7853982
  %vm86 = vcmp.lt.s32.totalorder %v80, 0
  %v87 = vand.u32 %v80, 2139095040
  %v88 = vshrl.u32 %v87, 23
  %v89 = vsub.s32 %v88, 127
  %v90 = vand.u32 2147483647, %v80
  %v91 = vand.u32 %v90, 8388607
  %v92 = vor.u32 %v91, 8388608
  %v93 = vsub.s32 0, %v92
  %v94 = vadd.s32 %v89, 1
  %vm95 = vcmp.gt.s32.totalorder %v94, 0
  %v96 = vsel %vm95, %v94, 0
  %v97 = vshrl.u32 %v96, 5
  %v98 = vand.u32 %v96, 31
  %v99 = vsub.s32 32, %v98
  %v100 = vshrl.u32 683565275, %v99
  %v101 = vshll.u32 683565275, %v98
  %v102 = vshrl.u32 2475754826, %v99
  %v103 = vor.u32 %v101, %v102
  %v104 = vshll.u32 2475754826, %v98
  %v105 = vshrl.u32 2131351028, %v99
  %v106 = vor.u32 %v104, %v105
  %v107 = vshll.u32 2131351028, %v98
  %v108 = vshrl.u32 2102212464, %v99
  %v109 = vor.u32 %v107, %v108
  %v110 = vshll.u32 2102212464, %v98
  %v111 = vshrl.u32 920167782, %v99
  %v112 = vor.u32 %v110, %v111
  %v113 = vshll.u32 920167782, %v98
  %v114 = vshrl.u32 1326507024, %v99
  %v115 = vor.u32 %v113, %v114
  %vm116 = vcmp.lt.s32.totalorder %v97, 1
  %vm117 = vcmp.lt.s32.totalorder %v97, 2
  %vm118 = vcmp.lt.s32.totalorder %v97, 3
  %vm119 = vcmp.lt.s32.totalorder %v97, 4
  %v120 = vsel %vm116, %v100, %v103
  %v121 = vsel %vm119, %v109, 2102212464
  %v122 = vsel %vm118, %v106, %v121
  %v123 = vsel %vm117, %v120, %v122
  %v124 = vsel %vm116, %v103, %v106
  %v125 = vsel %vm119, %v112, 920167782
  %v126 = vsel %vm118, %v109, %v125
  %v127 = vsel %vm117, %v124, %v126
  %v128 = vsel %vm116, %v106, %v109
  %v129 = vsel %vm119, %v115, 1326507024
  %v130 = vsel %vm118, %v112, %v129
  %v131 = vsel %vm117, %v128, %v130
  %v132 = vshll.u32 %v92, 8
  %v133 = vmul.u32.u64.compose %v132, %v131
  %v134 = vextract.low.u32 %v133
  %v135 = vextract.high.u32 %v133
  %v136 = vmul.u32.u64.compose %v132, %v127
  %v137 = vextract.low.u32 %v136
  %v138 = vextract.high.u32 %v136
  %v139 = vmul.u32 %v132, %v123
  %v140 = vadd.s32 %v135, %v137
  %vm141 = vc.u32 %v135, %v137
  %v142 = vadd.s32 %v138, 1
  %v143 = vsel %vm141, %v142, %v138
  %v144 = vadd.s32 %v139, %v143
  %v145 = vadd.s32 %v144, 536870912
  %v146 = vshrl.u32 %v145, 30
  %v147 = vshll.u32 %v146, 30
  %v148 = vsub.s32 %v144, %v147
  %vm149 = vcmp.lt.s32.totalorder %v148, 0
  %v150 = vsub.s32 0, %v148
  %v151 = vsel %vm149, %v150, %v148
  %v152 = vclz %v151
  %v153 = vsub.s32 %v152, 2
  %vm154 = vcmp.gt.s32.totalorder 0, %v153
  %v155 = vsel %vm154, 0, %v153
  %v156 = vsub.s32 32, %v155
  %v157 = vshll.u32 %v148, %v155
  %v158 = vshrl.u32 %v140, %v156
  %v159 = vor.u32 %v157, %v158
  %v160 = vsub.s32 4294967266, %v155
  %v161 = vadd.s32 %v160, 127
  %v162 = vshll.u32 %v161, 23
  %v163 = vor.u32 4788187, %v162
  %v164 = vand.u32 2147483647, %v163
  %v166 = vcvt.s32.f32 %v159
  %v167 = vmul.f32 %v166, %v164
  %v168 = vxor.u32 %v167, 2147483648
  %v169 = vsel %vm86, %v168, %v167
  %v170 = vsub.s32 4, %v146
  %v171 = vsel %vm86, %v170, %v146
  %v172 = vsel %vm85, %v80, %v169
  %v173 = vsel %vm85, 0, %v171
  %v174 = vcosq.f32.pop %v172
  %v175 = vsinq.f32.pop %v172
  %vm176 = vweird.f32 %v80
  %v177 = vadd.s32 %v173, 3
  %v178 = vand.u32 %v177, 3
  %vm179 = vcmp.lt.s32.totalorder %v178, 2
  %vm180 = vcmp.eq.s32.totalorder %v178, 0
  %v181 = vxor.u32 %v175, 2147483648
  %v182 = vsel %vm180, %v174, %v181
  %vm183 = vcmp.eq.s32.totalorder %v178, 2
  %v184 = vxor.u32 %v174, 2147483648
  %v185 = vsel %vm183, %v184, %v175
  %v186 = vsel %vm179, %v182, %v185
  %v187 = vsel %vm176, nan, %v186
  %v188 = vand.u32 2147483647, %v81
  %vm189 = vcmp.le.f32.partialorder %v188, 0.7853982
  %vm190 = vcmp.lt.s32.totalorder %v81, 0
  %v191 = vand.u32 %v81, 2139095040
  %v192 = vshrl.u32 %v191, 23
  %v193 = vsub.s32 %v192, 127
  %v194 = vand.u32 2147483647, %v81
  %v195 = vand.u32 %v194, 8388607
  %v196 = vor.u32 %v195, 8388608
  %v197 = vsub.s32 0, %v196
  %v198 = vadd.s32 %v193, 1
  %vm199 = vcmp.gt.s32.totalorder %v198, 0
  %v200 = vsel %vm199, %v198, 0
  %v201 = vshrl.u32 %v200, 5
  %v202 = vand.u32 %v200, 31
  %v203 = vsub.s32 32, %v202
  %v204 = vshrl.u32 683565275, %v203
  %v205 = vshll.u32 683565275, %v202
  %v206 = vshrl.u32 2475754826, %v203
  %v207 = vor.u32 %v205, %v206
  %v208 = vshll.u32 2475754826, %v202
  %v209 = vshrl.u32 2131351028, %v203
  %v210 = vor.u32 %v208, %v209
  %v211 = vshll.u32 2131351028, %v202
  %v212 = vshrl.u32 2102212464, %v203
  %v213 = vor.u32 %v211, %v212
  %v214 = vshll.u32 2102212464, %v202
  %v215 = vshrl.u32 920167782, %v203
  %v216 = vor.u32 %v214, %v215
  %v217 = vshll.u32 920167782, %v202
  %v218 = vshrl.u32 1326507024, %v203
  %v219 = vor.u32 %v217, %v218
  %vm220 = vcmp.lt.s32.totalorder %v201, 1
  %vm221 = vcmp.lt.s32.totalorder %v201, 2
  %vm222 = vcmp.lt.s32.totalorder %v201, 3
  %vm223 = vcmp.lt.s32.totalorder %v201, 4
  %v224 = vsel %vm220, %v204, %v207
  %v225 = vsel %vm223, %v213, 2102212464
  %v226 = vsel %vm222, %v210, %v225
  %v227 = vsel %vm221, %v224, %v226
  %v228 = vsel %vm220, %v207, %v210
  %v229 = vsel %vm223, %v216, 920167782
  %v230 = vsel %vm222, %v213, %v229
  %v231 = vsel %vm221, %v228, %v230
  %v232 = vsel %vm220, %v210, %v213
  %v233 = vsel %vm223, %v219, 1326507024
  %v234 = vsel %vm222, %v216, %v233
  %v235 = vsel %vm221, %v232, %v234
  %v236 = vshll.u32 %v196, 8
  %v237 = vmul.u32.u64.compose %v236, %v235
  %v238 = vextract.low.u32 %v237
  %v239 = vextract.high.u32 %v237
  %v240 = vmul.u32.u64.compose %v236, %v231
  %v241 = vextract.low.u32 %v240
  %v242 = vextract.high.u32 %v240
  %v243 = vmul.u32 %v236, %v227
  %v244 = vadd.s32 %v239, %v241
  %vm245 = vc.u32 %v239, %v241
  %v246 = vadd.s32 %v242, 1
  %v247 = vsel %vm245, %v246, %v242
  %v248 = vadd.s32 %v243, %v247
  %v249 = vadd.s32 %v248, 536870912
  %v250 = vshrl.u32 %v249, 30
  %v251 = vshll.u32 %v250, 30
  %v252 = vsub.s32 %v248, %v251
  %vm253 = vcmp.lt.s32.totalorder %v252, 0
  %v254 = vsub.s32 0, %v252
  %v255 = vsel %vm253, %v254, %v252
  %v256 = vclz %v255
  %v257 = vsub.s32 %v256, 2
  %vm258 = vcmp.gt.s32.totalorder 0, %v257
  %v259 = vsel %vm258, 0, %v257
  %v260 = vsub.s32 32, %v259
  %v261 = vshll.u32 %v252, %v259
  %v262 = vshrl.u32 %v244, %v260
  %v263 = vor.u32 %v261, %v262
  %v264 = vsub.s32 4294967266, %v259
  %v265 = vadd.s32 %v264, 127
  %v266 = vshll.u32 %v265, 23
  %v267 = vor.u32 4788187, %v266
  %v268 = vand.u32 2147483647, %v267
  %v270 = vcvt.s32.f32 %v263
  %v271 = vmul.f32 %v270, %v268
  %v272 = vxor.u32 %v271, 2147483648
  %v273 = vsel %vm190, %v272, %v271
  %v274 = vsub.s32 4, %v250
  %v275 = vsel %vm190, %v274, %v250
  %v276 = vsel %vm189, %v81, %v273
  %v277 = vsel %vm189, 0, %v275
  %v278 = vcosq.f32.pop %v276
  %v279 = vsinq.f32.pop %v276
  %vm280 = vweird.f32 %v81
  %v281 = vadd.s32 %v277, 3
  %v282 = vand.u32 %v281, 3
  %vm283 = vcmp.lt.s32.totalorder %v282, 2
  %vm284 = vcmp.eq.s32.totalorder %v282, 0
  %v285 = vxor.u32 %v279, 2147483648
  %v286 = vsel %vm284, %v278, %v285
  %vm287 = vcmp.eq.s32.totalorder %v282, 2
  %v288 = vxor.u32 %v278, 2147483648
  %v289 = vsel %vm287, %v288, %v279
  %v290 = vsel %vm283, %v286, %v289
  %v291 = vsel %vm280, nan, %v290
  %v292 = vand.u32 2147483647, %v82
  %vm293 = vcmp.le.f32.partialorder %v292, 0.7853982
  %vm294 = vcmp.lt.s32.totalorder %v82, 0
  %v295 = vand.u32 %v82, 2139095040
  %v296 = vshrl.u32 %v295, 23
  %v297 = vsub.s32 %v296, 127
  %v298 = vand.u32 2147483647, %v82
  %v299 = vand.u32 %v298, 8388607
  %v300 = vor.u32 %v299, 8388608
  %v301 = vsub.s32 0, %v300
  %v302 = vadd.s32 %v297, 1
  %vm303 = vcmp.gt.s32.totalorder %v302, 0
  %v304 = vsel %vm303, %v302, 0
  %v305 = vshrl.u32 %v304, 5
  %v306 = vand.u32 %v304, 31
  %v307 = vsub.s32 32, %v306
  %v308 = vshrl.u32 683565275, %v307
  %v309 = vshll.u32 683565275, %v306
  %v310 = vshrl.u32 2475754826, %v307
  %v311 = vor.u32 %v309, %v310
  %v312 = vshll.u32 2475754826, %v306
  %v313 = vshrl.u32 2131351028, %v307
  %v314 = vor.u32 %v312, %v313
  %v315 = vshll.u32 2131351028, %v306
  %v316 = vshrl.u32 2102212464, %v307
  %v317 = vor.u32 %v315, %v316
  %v318 = vshll.u32 2102212464, %v306
  %v319 = vshrl.u32 920167782, %v307
  %v320 = vor.u32 %v318, %v319
  %v321 = vshll.u32 920167782, %v306
  %v322 = vshrl.u32 1326507024, %v307
  %v323 = vor.u32 %v321, %v322
  %vm324 = vcmp.lt.s32.totalorder %v305, 1
  %vm325 = vcmp.lt.s32.totalorder %v305, 2
  %vm326 = vcmp.lt.s32.totalorder %v305, 3
  %vm327 = vcmp.lt.s32.totalorder %v305, 4
  %v328 = vsel %vm324, %v308, %v311
  %v329 = vsel %vm327, %v317, 2102212464
  %v330 = vsel %vm326, %v314, %v329
  %v331 = vsel %vm325, %v328, %v330
  %v332 = vsel %vm324, %v311, %v314
  %v333 = vsel %vm327, %v320, 920167782
  %v334 = vsel %vm326, %v317, %v333
  %v335 = vsel %vm325, %v332, %v334
  %v336 = vsel %vm324, %v314, %v317
  %v337 = vsel %vm327, %v323, 1326507024
  %v338 = vsel %vm326, %v320, %v337
  %v339 = vsel %vm325, %v336, %v338
  %v340 = vshll.u32 %v300, 8
  %v341 = vmul.u32.u64.compose %v340, %v339
  %v342 = vextract.low.u32 %v341
  %v343 = vextract.high.u32 %v341
  %v344 = vmul.u32.u64.compose %v340, %v335
  %v345 = vextract.low.u32 %v344
  %v346 = vextract.high.u32 %v344
  %v347 = vmul.u32 %v340, %v331
  %v348 = vadd.s32 %v343, %v345
  %vm349 = vc.u32 %v343, %v345
  %v350 = vadd.s32 %v346, 1
  %v351 = vsel %vm349, %v350, %v346
  %v352 = vadd.s32 %v347, %v351
  %v353 = vadd.s32 %v352, 536870912
  %v354 = vshrl.u32 %v353, 30
  %v355 = vshll.u32 %v354, 30
  %v356 = vsub.s32 %v352, %v355
  %vm357 = vcmp.lt.s32.totalorder %v356, 0
  %v358 = vsub.s32 0, %v356
  %v359 = vsel %vm357, %v358, %v356
  %v360 = vclz %v359
  %v361 = vsub.s32 %v360, 2
  %vm362 = vcmp.gt.s32.totalorder 0, %v361
  %v363 = vsel %vm362, 0, %v361
  %v364 = vsub.s32 32, %v363
  %v365 = vshll.u32 %v356, %v363
  %v366 = vshrl.u32 %v348, %v364
  %v367 = vor.u32 %v365, %v366
  %v368 = vsub.s32 4294967266, %v363
  %v369 = vadd.s32 %v368, 127
  %v370 = vshll.u32 %v369, 23
  %v371 = vor.u32 4788187, %v370
  %v372 = vand.u32 2147483647, %v371
  %v374 = vcvt.s32.f32 %v367
  %v375 = vmul.f32 %v374, %v372
  %v376 = vxor.u32 %v375, 2147483648
  %v377 = vsel %vm294, %v376, %v375
  %v378 = vsub.s32 4, %v354
  %v379 = vsel %vm294, %v378, %v354
  %v380 = vsel %vm293, %v82, %v377
  %v381 = vsel %vm293, 0, %v379
  %v382 = vcosq.f32.pop %v380
  %v383 = vsinq.f32.pop %v380
  %vm384 = vweird.f32 %v82
  %v385 = vadd.s32 %v381, 3
  %v386 = vand.u32 %v385, 3
  %vm387 = vcmp.lt.s32.totalorder %v386, 2
  %vm388 = vcmp.eq.s32.totalorder %v386, 0
  %v389 = vxor.u32 %v383, 2147483648
  %v390 = vsel %vm388, %v382, %v389
  %vm391 = vcmp.eq.s32.totalorder %v386, 2
  %v392 = vxor.u32 %v382, 2147483648
  %v393 = vsel %vm391, %v392, %v383
  %v394 = vsel %vm387, %v390, %v393
  %v395 = vsel %vm384, nan, %v394
  %v396 = vand.u32 2147483647, %v83
  %vm397 = vcmp.le.f32.partialorder %v396, 0.7853982
  %vm398 = vcmp.lt.s32.totalorder %v83, 0
  %v399 = vand.u32 %v83, 2139095040
  %v400 = vshrl.u32 %v399, 23
  %v401 = vsub.s32 %v400, 127
  %v402 = vand.u32 2147483647, %v83
  %v403 = vand.u32 %v402, 8388607
  %v404 = vor.u32 %v403, 8388608
  %v405 = vsub.s32 0, %v404
  %v406 = vadd.s32 %v401, 1
  %vm407 = vcmp.gt.s32.totalorder %v406, 0
  %v408 = vsel %vm407, %v406, 0
  %v409 = vshrl.u32 %v408, 5
  %v410 = vand.u32 %v408, 31
  %v411 = vsub.s32 32, %v410
  %v412 = vshrl.u32 683565275, %v411
  %v413 = vshll.u32 683565275, %v410
  %v414 = vshrl.u32 2475754826, %v411
  %v415 = vor.u32 %v413, %v414
  %v416 = vshll.u32 2475754826, %v410
  %v417 = vshrl.u32 2131351028, %v411
  %v418 = vor.u32 %v416, %v417
  %v419 = vshll.u32 2131351028, %v410
  %v420 = vshrl.u32 2102212464, %v411
  %v421 = vor.u32 %v419, %v420
  %v422 = vshll.u32 2102212464, %v410
  %v423 = vshrl.u32 920167782, %v411
  %v424 = vor.u32 %v422, %v423
  %v425 = vshll.u32 920167782, %v410
  %v426 = vshrl.u32 1326507024, %v411
  %v427 = vor.u32 %v425, %v426
  %vm428 = vcmp.lt.s32.totalorder %v409, 1
  %vm429 = vcmp.lt.s32.totalorder %v409, 2
  %vm430 = vcmp.lt.s32.totalorder %v409, 3
  %vm431 = vcmp.lt.s32.totalorder %v409, 4
  %v432 = vsel %vm428, %v412, %v415
  %v433 = vsel %vm431, %v421, 2102212464
  %v434 = vsel %vm430, %v418, %v433
  %v435 = vsel %vm429, %v432, %v434
  %v436 = vsel %vm428, %v415, %v418
  %v437 = vsel %vm431, %v424, 920167782
  %v438 = vsel %vm430, %v421, %v437
  %v439 = vsel %vm429, %v436, %v438
  %v440 = vsel %vm428, %v418, %v421
  %v441 = vsel %vm431, %v427, 1326507024
  %v442 = vsel %vm430, %v424, %v441
  %v443 = vsel %vm429, %v440, %v442
  %v444 = vshll.u32 %v404, 8
  %v445 = vmul.u32.u64.compose %v444, %v443
  %v446 = vextract.low.u32 %v445
  %v447 = vextract.high.u32 %v445
  %v448 = vmul.u32.u64.compose %v444, %v439
  %v449 = vextract.low.u32 %v448
  %v450 = vextract.high.u32 %v448
  %v451 = vmul.u32 %v444, %v435
  %v452 = vadd.s32 %v447, %v449
  %vm453 = vc.u32 %v447, %v449
  %v454 = vadd.s32 %v450, 1
  %v455 = vsel %vm453, %v454, %v450
  %v456 = vadd.s32 %v451, %v455
  %v457 = vadd.s32 %v456, 536870912
  %v458 = vshrl.u32 %v457, 30
  %v459 = vshll.u32 %v458, 30
  %v460 = vsub.s32 %v456, %v459
  %vm461 = vcmp.lt.s32.totalorder %v460, 0
  %v462 = vsub.s32 0, %v460
  %v463 = vsel %vm461, %v462, %v460
  %v464 = vclz %v463
  %v465 = vsub.s32 %v464, 2
  %vm466 = vcmp.gt.s32.totalorder 0, %v465
  %v467 = vsel %vm466, 0, %v465
  %v468 = vsub.s32 32, %v467
  %v469 = vshll.u32 %v460, %v467
  %v470 = vshrl.u32 %v452, %v468
  %v471 = vor.u32 %v469, %v470
  %v472 = vsub.s32 4294967266, %v467
  %v473 = vadd.s32 %v472, 127
  %v474 = vshll.u32 %v473, 23
  %v475 = vor.u32 4788187, %v474
  %v476 = vand.u32 2147483647, %v475
  %v478 = vcvt.s32.f32 %v471
  %v479 = vmul.f32 %v478, %v476
  %v480 = vxor.u32 %v479, 2147483648
  %v481 = vsel %vm398, %v480, %v479
  %v482 = vsub.s32 4, %v458
  %v483 = vsel %vm398, %v482, %v458
  %v484 = vsel %vm397, %v83, %v481
  %v485 = vsel %vm397, 0, %v483
  %v486 = vcosq.f32.pop %v484
  %v487 = vsinq.f32.pop %v484
  %vm488 = vweird.f32 %v83
  %v489 = vadd.s32 %v485, 3
  %v490 = vand.u32 %v489, 3
  %vm491 = vcmp.lt.s32.totalorder %v490, 2
  %vm492 = vcmp.eq.s32.totalorder %v490, 0
  %v493 = vxor.u32 %v487, 2147483648
  %v494 = vsel %vm492, %v486, %v493
  %vm495 = vcmp.eq.s32.totalorder %v490, 2
  %v496 = vxor.u32 %v486, 2147483648
  %v497 = vsel %vm495, %v496, %v487
  %v498 = vsel %vm491, %v494, %v497
  %v499 = vsel %vm488, nan, %v498
  %v500 = vld [vmem:[%s0] sm:$0xff]
  %v501 = vld [vmem:[%s0 + $0x8] sm:$0xff]
  %v504 = vcombine.high %v500, %v500
  %v505 = vcombine.high %v501, %v501
  %508 = vst [vmem:[%s2] sm:$0xf] %v500
  %509 = vst [vmem:[%s2 + $0x8] sm:$0xf] %v504
  %510 = vst [vmem:[%s2 + $0x20] sm:$0xf] %v501
  %511 = vst [vmem:[%s2 + $0x28] sm:$0xf] %v505
  %v516 = vrot.slane %v187, 4
  %v517 = vrot.slane %v291, 4
  %v518 = vrot.slane %v395, 4
  %v519 = vrot.slane %v499, 4
  %524 = vst [vmem:[%s2] sm:$0xf0] %v516
  %525 = vst [vmem:[%s2 + $0x8] sm:$0xf0] %v517
  %526 = vst [vmem:[%s2 + $0x10] sm:$0xf] %v516
  %527 = vst [vmem:[%s2 + $0x18] sm:$0xf] %v517
  %528 = vst [vmem:[%s2 + $0x20] sm:$0xf0] %v518
  %529 = vst [vmem:[%s2 + $0x28] sm:$0xf0] %v519
  %530 = vst [vmem:[%s2 + $0x30] sm:$0xf] %v518
  %531 = vst [vmem:[%s2 + $0x38] sm:$0xf] %v519
  // Predicated region
  $region10: #{tpu_custom_call.1} parent=0 // pred_check
    _
  $region11: #{tpu_custom_call.1} parent=0 // pred_check_branch
    %533 = sbr.rel (0) target = $region13
  $region12: #{tpu_custom_call.1} parent=0 // pred_region
    _
  $region13: #{tpu_custom_call.1} parent=0 // pred_fallthru
    _
  // Predicated region
  $region14: #{tpu_custom_call.1} parent=0 // pred_check
    _
  $region15: #{tpu_custom_call.1} parent=0 // pred_check_branch
    %535 = sbr.rel (0) target = $region17
  $region16: #{tpu_custom_call.1} parent=0 // pred_region
    _
  $region17: #{tpu_custom_call.1} parent=0 // pred_fallthru
    _

</llo_original>
